<compile_context>
chip_gen: v7x
topology: tpu7x:2x2x1
jax: 0.10.0
libtpu: 0.0.40
codegen_flags: <defaults>
</compile_context>

<pallas_src>
import functools
import math

import jax
import jax.numpy as jnp
from jax.experimental import pallas as pl
from jax.experimental.pallas import tpu as pltpu

NUM_FEATS = 24           # hard-coded 24 in the PyTorch module (Theta1, BatchNorm1d)
BN_EPS = 1e-5


def _round_up(n, m):
    return ((n + m - 1) // m) * m


def _stgcn_kernel(x_ref, a_ref, th_ref, g_ref, b_ref, out_ref,
                  w_ref, slab_ref, sum_ref, sq_ref, scale_ref, shift_ref,
                  *, batch, tile, use_slab, needs_mask):
    """Fused two-pass kernel over grid (pass, batch_tile)."""
    p = pl.program_id(0)   # 0 = stats pass, 1 = normalize pass
    i = pl.program_id(1)   # batch-tile index

    @pl.when((p == 0) & (i == 0))
    def _init():
        # W = A_hat.T @ Theta1, computed once on the MXU from the (24,24) inputs
        # (contraction on dim 0 of A_hat), so no wrapper-side dot is needed.
        w_ref[...] = jax.lax.dot_general(
            a_ref[...], th_ref[...],
            dimension_numbers=(((0,), (0,)), ((), ())),
            preferred_element_type=jnp.float32,
        )
        sum_ref[...] = jnp.zeros_like(sum_ref)
        sq_ref[...] = jnp.zeros_like(sq_ref)

    @pl.when(p == 0)
    def _stats_pass():
        # t2 = relu(X @ W): one plain-orientation MXU matmul per tile.
        t2 = jnp.maximum(
            jnp.dot(x_ref[...], w_ref[...], preferred_element_type=jnp.float32),
            0.0)
        if use_slab:
            # Keep t2 resident in VMEM so pass 1 does not re-read X from HBM.
            slab_ref[i] = t2
        if needs_mask:
            # Pallas does not zero-fill out-of-bounds rows of partial input
            # blocks: mask them out of the BN statistics.
            row = i * tile + jax.lax.broadcasted_iota(
                jnp.int32, (tile, NUM_FEATS), 0)
            t2 = jnp.where(row < batch, t2, 0.0)
        sum_ref[...] += jnp.sum(t2, axis=0, keepdims=True)
        sq_ref[...] += jnp.sum(t2 * t2, axis=0, keepdims=True)

    @pl.when((p == 1) & (i == 0))
    def _fold_bn():
        # Fold BatchNorm (training-mode, biased variance) into one FMA/element:
        #   y = t2 * scale + shift.  Clamp var >= 0 to guard against
        #   E[x^2] - E[x]^2 cancellation in f32.
        n = jnp.float32(batch)
        mean = sum_ref[...] / n
        var = jnp.maximum(sq_ref[...] / n - mean * mean, 0.0)
        inv_std = jax.lax.rsqrt(var + BN_EPS)
        scale = g_ref[...] * inv_std
        scale_ref[...] = scale
        shift_ref[...] = b_ref[...] - mean * scale

    @pl.when(p == 1)
    def _normalize_pass():
        if use_slab:
            t2 = slab_ref[i]
        else:
            # Large-batch fallback: recompute t2 (MXU has slack; the cost is the
            # second HBM read of X, which the BlockSpec re-fetches in this mode).
            t2 = jnp.maximum(
                jnp.dot(x_ref[...], w_ref[...], preferred_element_type=jnp.float32),
                0.0)
        # Out-of-bounds rows of the last partial block are discarded by Pallas
        # on writeback, so no masking is needed here.
        out_ref[...] = (t2 * scale_ref[...] + shift_ref[...]).astype(out_ref.dtype)


def stgcn_block_forward(x, a_hat, theta, gamma, beta, *,
                        max_batch_tile=8192,
                        max_slab_bytes=8 * 1024 * 1024):
    """x: (B, 24) f32, a_hat/theta: (24, 24), gamma/beta: (24,) -> (B, 24)."""
    B, F_ = x.shape
    assert F_ == NUM_FEATS and a_hat.shape == (NUM_FEATS, NUM_FEATS)
    assert theta.shape == (NUM_FEATS, NUM_FEATS)

    # Large batch tile first (amortizes the ~0.35us per-grid-step overhead),
    # then cover B with pl.cdiv; partial last tile handled in-kernel.
    bt = min(_round_up(B, 8), _round_up(max_batch_tile, 8))
    num_tiles = int(pl.cdiv(B, bt))
    needs_mask = (B % bt) != 0

    # VMEM footprint of the resident t2 slab: last dim 24 pads to 128 lanes in
    # VMEM, i.e. 512 bytes per row. Use the slab only while it fits the budget
    # (keeps the kernel under the scoped-VMEM limit on v7x's 64 MiB VMEM too).
    use_slab = (num_tiles * bt * 512) <= max_slab_bytes

    kernel = functools.partial(
        _stgcn_kernel, batch=B, tile=bt, use_slab=use_slab, needs_mask=needs_mask)

    if use_slab:
        # Pass 0: stream tile i. Pass 1: hold the last tile (no re-fetch of X).
        x_index = lambda p, i: (i * (1 - p) + (num_tiles - 1) * p, 0)
        slab_shape = (num_tiles, bt, NUM_FEATS)
    else:
        # Recompute mode: re-fetch tile i during pass 1 as well.
        x_index = lambda p, i: (i, 0)
        slab_shape = (1, 8, NUM_FEATS)          # unused placeholder

    x_spec = pl.BlockSpec((bt, NUM_FEATS), x_index)
    mat_spec = pl.BlockSpec((NUM_FEATS, NUM_FEATS), lambda p, i: (0, 0))
    vec_spec = pl.BlockSpec((1, NUM_FEATS), lambda p, i: (0, 0))
    # Output blocks: hold block 0 during pass 0 (never written there), write
    # tile i during pass 1 -> exactly one HBM write per output tile.
    out_spec = pl.BlockSpec((bt, NUM_FEATS), lambda p, i: (i * p, 0))

    out = pl.pallas_call(
        kernel,
        out_shape=jax.ShapeDtypeStruct((B, NUM_FEATS), jnp.float32),
        grid=(2, num_tiles),
        in_specs=[x_spec, mat_spec, mat_spec, vec_spec, vec_spec],
        out_specs=out_spec,
        scratch_shapes=[
            pltpu.VMEM((NUM_FEATS, NUM_FEATS), jnp.float32),   # W = A_hat.T @ Theta1
            pltpu.VMEM(slab_shape, jnp.float32),                # resident t2 slab
            pltpu.VMEM((1, NUM_FEATS), jnp.float32),            # sum(t2)
            pltpu.VMEM((1, NUM_FEATS), jnp.float32),            # sum(t2^2)
            pltpu.VMEM((1, NUM_FEATS), jnp.float32),            # BN scale
            pltpu.VMEM((1, NUM_FEATS), jnp.float32),            # BN shift
        ],
        compiler_params=pltpu.CompilerParams(
            dimension_semantics=("arbitrary", "arbitrary"),
            vmem_limit_bytes=32 * 1024 * 1024,
        ),
    )(x, a_hat, theta,
      gamma.reshape(1, NUM_FEATS).astype(jnp.float32),
      beta.reshape(1, NUM_FEATS).astype(jnp.float32))
    return out


def reference_forward(x, a_hat, theta, gamma, beta):
    lfs = x @ a_hat.T                           # == einsum('ij,jk->ki', A_hat, X.T)
    t2 = jnp.maximum(lfs @ theta, 0.0)
    mean = jnp.mean(t2, axis=0, keepdims=True)
    var = jnp.mean((t2 - mean) ** 2, axis=0, keepdims=True)
    return (t2 - mean) / jnp.sqrt(var + BN_EPS) * gamma + beta


if __name__ == "__main__":
    key = jax.random.PRNGKey(0)
    k_x, k_a, k_theta = jax.random.split(key, 3)

    B = 200  # deliberately not a multiple of 128

    # Input X: (batch, num_features=24)
    x = jax.random.normal(k_x, (B, NUM_FEATS), dtype=jnp.float32)

    # Deterministic "normalized adjacency"-like matrix (24, 24).
    a_raw = jnp.abs(jax.random.normal(k_a, (NUM_FEATS, NUM_FEATS), dtype=jnp.float32))
    a_hat = a_raw / jnp.sum(a_raw, axis=1, keepdims=True)

    # Theta1 ~ U(-stdv, stdv), stdv = 1/sqrt(24)  (matches reset_parameters).
    stdv = 1.0 / math.sqrt(NUM_FEATS)
    theta = jax.random.uniform(
        k_theta, (NUM_FEATS, NUM_FEATS), dtype=jnp.float32, minval=-stdv, maxval=stdv)

    # BatchNorm1d affine params (default init: weight=1, bias=0).
    gamma = jnp.ones((NUM_FEATS,), dtype=jnp.float32)
    beta = jnp.zeros((NUM_FEATS,), dtype=jnp.float32)

    # TODO(synk): TimeBlock (temporal1/temporal2) conv layers are constructed in
    # __init__ but never used in STGCNBlock.forward, so they are intentionally
    # not implemented here. BatchNorm running stats are likewise not updated.

    ref = reference_forward(x, a_hat, theta,
                            gamma.reshape(1, -1), beta.reshape(1, -1))

    # Path 1: single tile (bt = round_up(B,8)), resident t2 slab, no masking.
    out = stgcn_block_forward(x, a_hat, theta, gamma, beta)
    jax.block_until_ready(out)
    assert out.shape == (B, NUM_FEATS)
    assert jnp.allclose(out, ref, atol=1e-3, rtol=1e-3), "slab/single-tile mismatch"

    # Path 2: multiple tiles + partial last tile (in-kernel stats masking), slab mode.
    out2 = stgcn_block_forward(x, a_hat, theta, gamma, beta, max_batch_tile=128)
    jax.block_until_ready(out2)
    assert jnp.allclose(out2, ref, atol=1e-3, rtol=1e-3), "masked multi-tile mismatch"

    # Path 3: large-batch fallback (slab disabled -> recompute t2 in pass 1).
    out3 = stgcn_block_forward(x, a_hat, theta, gamma, beta,
                               max_batch_tile=128, max_slab_bytes=0)
    jax.block_until_ready(out3)
    assert jnp.allclose(out3, ref, atol=1e-3, rtol=1e-3), "recompute-mode mismatch"

    print("KERNEL_OK")
</pallas_src>

<mosaic_0001>
module attributes {stable_mosaic.version = 11 : i64} {
  func.func @_stgcn_kernel(%arg0: i32, %arg1: i32, %arg2: memref<200x24xf32, #tpu.memory_space<vmem>>, %arg3: memref<24x24xf32, #tpu.memory_space<vmem>>, %arg4: memref<24x24xf32, #tpu.memory_space<vmem>>, %arg5: memref<1x24xf32, #tpu.memory_space<vmem>>, %arg6: memref<1x24xf32, #tpu.memory_space<vmem>>, %arg7: memref<200x24xf32, #tpu.memory_space<vmem>>, %arg8: memref<24x24xf32, #tpu.memory_space<vmem>>, %arg9: memref<1x200x24xf32, #tpu.memory_space<vmem>>, %arg10: memref<1x24xf32, #tpu.memory_space<vmem>>, %arg11: memref<1x24xf32, #tpu.memory_space<vmem>>, %arg12: memref<1x24xf32, #tpu.memory_space<vmem>>, %arg13: memref<1x24xf32, #tpu.memory_space<vmem>>) attributes {dimension_semantics = [#tpu.dimension_semantics<arbitrary>, #tpu.dimension_semantics<arbitrary>], iteration_bounds = array<i64: 2, 1>, scalar_prefetch = 0 : i64, scratch_operands = 6 : i64, tpu.core_type = #tpu.core_type<tc>, window_params = [{transform_indices = @transform_0, window_bounds = array<i64: 200, 24>}, {pipeline_mode = #tpu.pipeline_mode<synchronous>, transform_indices = @transform_1, window_bounds = array<i64: 24, 24>}, {pipeline_mode = #tpu.pipeline_mode<synchronous>, transform_indices = @transform_2, window_bounds = array<i64: 24, 24>}, {pipeline_mode = #tpu.pipeline_mode<synchronous>, transform_indices = @transform_3, window_bounds = array<i64: 1, 24>}, {pipeline_mode = #tpu.pipeline_mode<synchronous>, transform_indices = @transform_4, window_bounds = array<i64: 1, 24>}, {transform_indices = @transform_5, window_bounds = array<i64: 200, 24>}]} {
    %c0_i32 = arith.constant 0 : i32
    %0 = arith.cmpi eq, %arg0, %c0_i32 : i32
    %c0_i32_0 = arith.constant 0 : i32
    %1 = arith.cmpi eq, %arg1, %c0_i32_0 : i32
    %2 = arith.andi %0, %1 : i1
    %3 = arith.extui %2 : i1 to i32
    %c0_i32_1 = arith.constant 0 : i32
    %4 = arith.cmpi ne, %3, %c0_i32_1 : i32
    scf.if %4 {
      %c0 = arith.constant 0 : index
      %c0_8 = arith.constant 0 : index
      %16 = vector.load %arg3[%c0, %c0_8] : memref<24x24xf32, #tpu.memory_space<vmem>>, vector<24x24xf32>
      %c0_9 = arith.constant 0 : index
      %c0_10 = arith.constant 0 : index
      %17 = vector.load %arg4[%c0_9, %c0_10] : memref<24x24xf32, #tpu.memory_space<vmem>>, vector<24x24xf32>
      %cst = arith.constant dense<0.000000e+00> : vector<24x24xf32>
      %18 = tpu.matmul %16, %17, %cst {dimension_numbers = #tpu.dot_dimension_numbers<[0], [0], [1], [1], [0, 1, 1, 1], [], []>} : vector<24x24xf32>, vector<24x24xf32>, vector<24x24xf32> -> vector<24x24xf32>
      %c0_11 = arith.constant 0 : index
      %c0_12 = arith.constant 0 : index
      %19 = vector.load %arg8[%c0_11, %c0_12] : memref<24x24xf32, #tpu.memory_space<vmem>>, vector<24x24xf32>
      tpu.vector_store %arg8[%c0_11, %c0_12], %18 {strides = array<i32>} : memref<24x24xf32, #tpu.memory_space<vmem>>, vector<24x24xf32>,
      %cst_13 = arith.constant 0.000000e+00 : f32
      %20 = vector.broadcast %cst_13 : f32 to vector<1x24xf32>
      %c0_14 = arith.constant 0 : index
      %c0_15 = arith.constant 0 : index
      %21 = vector.load %arg10[%c0_14, %c0_15] : memref<1x24xf32, #tpu.memory_space<vmem>>, vector<1x24xf32>
      tpu.vector_store %arg10[%c0_14, %c0_15], %20 {strides = array<i32>} : memref<1x24xf32, #tpu.memory_space<vmem>>, vector<1x24xf32>,
      %cst_16 = arith.constant 0.000000e+00 : f32
      %22 = vector.broadcast %cst_16 : f32 to vector<1x24xf32>
      %c0_17 = arith.constant 0 : index
      %c0_18 = arith.constant 0 : index
      %23 = vector.load %arg11[%c0_17, %c0_18] : memref<1x24xf32, #tpu.memory_space<vmem>>, vector<1x24xf32>
      tpu.vector_store %arg11[%c0_17, %c0_18], %22 {strides = array<i32>} : memref<1x24xf32, #tpu.memory_space<vmem>>, vector<1x24xf32>,
    } else {
    }
    %c0_i32_2 = arith.constant 0 : i32
    %5 = arith.cmpi eq, %arg0, %c0_i32_2 : i32
    %6 = arith.extui %5 : i1 to i32
    %c0_i32_3 = arith.constant 0 : i32
    %7 = arith.cmpi ne, %6, %c0_i32_3 : i32
    scf.if %7 {
      %c0 = arith.constant 0 : index
      %c0_8 = arith.constant 0 : index
      %16 = vector.load %arg2[%c0, %c0_8] : memref<200x24xf32, #tpu.memory_space<vmem>>, vector<200x24xf32>
      %c0_9 = arith.constant 0 : index
      %c0_10 = arith.constant 0 : index
      %17 = vector.load %arg8[%c0_9, %c0_10] : memref<24x24xf32, #tpu.memory_space<vmem>>, vector<24x24xf32>
      %cst = arith.constant dense<0.000000e+00> : vector<200x24xf32>
      %18 = tpu.matmul %16, %17, %cst {dimension_numbers = #tpu.dot_dimension_numbers<[1], [0], [0], [1], [0, 0, 1, 1], [], []>} : vector<200x24xf32>, vector<24x24xf32>, vector<200x24xf32> -> vector<200x24xf32>
      %cst_11 = arith.constant 0.000000e+00 : f32
      %19 = vector.broadcast %cst_11 : f32 to vector<200x24xf32>
      %20 = arith.maximumf %18, %19 : vector<200x24xf32>
      %21 = arith.index_cast %arg1 : i32 to index
      %c0_12 = arith.constant 0 : index
      %c0_13 = arith.constant 0 : index
      %22 = vector.load %arg9[%21, %c0_12, %c0_13] : memref<1x200x24xf32, #tpu.memory_space<vmem>>, vector<1x200x24xf32>
      %23 = vector.shape_cast %22 : vector<1x200x24xf32> to vector<200x24xf32>
      %24 = vector.shape_cast %20 : vector<200x24xf32> to vector<1x200x24xf32>
      tpu.vector_store %arg9[%21, %c0_12, %c0_13], %24 {strides = array<i32>} : memref<1x200x24xf32, #tpu.memory_space<vmem>>, vector<1x200x24xf32>,
      %c0_14 = arith.constant 0 : index
      %c0_15 = arith.constant 0 : index
      %25 = vector.load %arg10[%c0_14, %c0_15] : memref<1x24xf32, #tpu.memory_space<vmem>>, vector<1x24xf32>
      %cst_16 = arith.constant dense<0.000000e+00> : vector<24xf32>
      %26 = vector.multi_reduction <add>, %20, %cst_16 [0] : vector<200x24xf32> to vector<24xf32>
      %27 = vector.shape_cast %26 : vector<24xf32> to vector<1x24xf32>
      %28 = arith.addf %25, %27 : vector<1x24xf32>
      %c0_17 = arith.constant 0 : index
      %c0_18 = arith.constant 0 : index
      %29 = vector.load %arg10[%c0_17, %c0_18] : memref<1x24xf32, #tpu.memory_space<vmem>>, vector<1x24xf32>
      tpu.vector_store %arg10[%c0_17, %c0_18], %28 {strides = array<i32>} : memref<1x24xf32, #tpu.memory_space<vmem>>, vector<1x24xf32>,
      %c0_19 = arith.constant 0 : index
      %c0_20 = arith.constant 0 : index
      %30 = vector.load %arg11[%c0_19, %c0_20] : memref<1x24xf32, #tpu.memory_space<vmem>>, vector<1x24xf32>
      %31 = arith.mulf %20, %20 : vector<200x24xf32>
      %cst_21 = arith.constant dense<0.000000e+00> : vector<24xf32>
      %32 = vector.multi_reduction <add>, %31, %cst_21 [0] : vector<200x24xf32> to vector<24xf32>
      %33 = vector.shape_cast %32 : vector<24xf32> to vector<1x24xf32>
      %34 = arith.addf %30, %33 : vector<1x24xf32>
      %c0_22 = arith.constant 0 : index
      %c0_23 = arith.constant 0 : index
      %35 = vector.load %arg11[%c0_22, %c0_23] : memref<1x24xf32, #tpu.memory_space<vmem>>, vector<1x24xf32>
      tpu.vector_store %arg11[%c0_22, %c0_23], %34 {strides = array<i32>} : memref<1x24xf32, #tpu.memory_space<vmem>>, vector<1x24xf32>,
    } else {
    }
    %c1_i32 = arith.constant 1 : i32
    %8 = arith.cmpi eq, %arg0, %c1_i32 : i32
    %c0_i32_4 = arith.constant 0 : i32
    %9 = arith.cmpi eq, %arg1, %c0_i32_4 : i32
    %10 = arith.andi %8, %9 : i1
    %11 = arith.extui %10 : i1 to i32
    %c0_i32_5 = arith.constant 0 : i32
    %12 = arith.cmpi ne, %11, %c0_i32_5 : i32
    scf.if %12 {
      %c0 = arith.constant 0 : index
      %c0_8 = arith.constant 0 : index
      %16 = vector.load %arg10[%c0, %c0_8] : memref<1x24xf32, #tpu.memory_space<vmem>>, vector<1x24xf32>
      %cst = arith.constant 2.000000e+02 : f32
      %17 = vector.broadcast %cst : f32 to vector<1x24xf32>
      %18 = arith.divf %16, %17 : vector<1x24xf32>
      %c0_9 = arith.constant 0 : index
      %c0_10 = arith.constant 0 : index
      %19 = vector.load %arg11[%c0_9, %c0_10] : memref<1x24xf32, #tpu.memory_space<vmem>>, vector<1x24xf32>
      %cst_11 = arith.constant 2.000000e+02 : f32
      %20 = vector.broadcast %cst_11 : f32 to vector<1x24xf32>
      %21 = arith.divf %19, %20 : vector<1x24xf32>
      %22 = arith.mulf %18, %18 : vector<1x24xf32>
      %23 = arith.subf %21, %22 : vector<1x24xf32>
      %cst_12 = arith.constant 0.000000e+00 : f32
      %24 = vector.broadcast %cst_12 : f32 to vector<1x24xf32>
      %25 = arith.maximumf %23, %24 : vector<1x24xf32>
      %cst_13 = arith.constant 9.99999974E-6 : f32
      %26 = vector.broadcast %cst_13 : f32 to vector<1x24xf32>
      %27 = arith.addf %25, %26 : vector<1x24xf32>
      %28 = math.rsqrt %27 : vector<1x24xf32>
      %c0_14 = arith.constant 0 : index
      %c0_15 = arith.constant 0 : index
      %29 = vector.load %arg5[%c0_14, %c0_15] : memref<1x24xf32, #tpu.memory_space<vmem>>, vector<1x24xf32>
      %30 = arith.mulf %29, %28 : vector<1x24xf32>
      %c0_16 = arith.constant 0 : index
      %c0_17 = arith.constant 0 : index
      %31 = vector.load %arg12[%c0_16, %c0_17] : memref<1x24xf32, #tpu.memory_space<vmem>>, vector<1x24xf32>
      tpu.vector_store %arg12[%c0_16, %c0_17], %30 {strides = array<i32>} : memref<1x24xf32, #tpu.memory_space<vmem>>, vector<1x24xf32>,
      %c0_18 = arith.constant 0 : index
      %c0_19 = arith.constant 0 : index
      %32 = vector.load %arg6[%c0_18, %c0_19] : memref<1x24xf32, #tpu.memory_space<vmem>>, vector<1x24xf32>
      %33 = arith.mulf %18, %30 : vector<1x24xf32>
      %34 = arith.subf %32, %33 : vector<1x24xf32>
      %c0_20 = arith.constant 0 : index
      %c0_21 = arith.constant 0 : index
      %35 = vector.load %arg13[%c0_20, %c0_21] : memref<1x24xf32, #tpu.memory_space<vmem>>, vector<1x24xf32>
      tpu.vector_store %arg13[%c0_20, %c0_21], %34 {strides = array<i32>} : memref<1x24xf32, #tpu.memory_space<vmem>>, vector<1x24xf32>,
    } else {
    }
    %c1_i32_6 = arith.constant 1 : i32
    %13 = arith.cmpi eq, %arg0, %c1_i32_6 : i32
    %14 = arith.extui %13 : i1 to i32
    %c0_i32_7 = arith.constant 0 : i32
    %15 = arith.cmpi ne, %14, %c0_i32_7 : i32
    scf.if %15 {
      %16 = arith.index_cast %arg1 : i32 to index
      %c0 = arith.constant 0 : index
      %c0_8 = arith.constant 0 : index
      %17 = vector.load %arg9[%16, %c0, %c0_8] : memref<1x200x24xf32, #tpu.memory_space<vmem>>, vector<1x200x24xf32>
      %18 = vector.shape_cast %17 : vector<1x200x24xf32> to vector<200x24xf32>
      %c0_9 = arith.constant 0 : index
      %c0_10 = arith.constant 0 : index
      %19 = vector.load %arg12[%c0_9, %c0_10] : memref<1x24xf32, #tpu.memory_space<vmem>>, vector<1x24xf32>
      %20 = vector.broadcast %19 : vector<1x24xf32> to vector<200x24xf32>
      %21 = arith.mulf %18, %20 : vector<200x24xf32>
      %c0_11 = arith.constant 0 : index
      %c0_12 = arith.constant 0 : index
      %22 = vector.load %arg13[%c0_11, %c0_12] : memref<1x24xf32, #tpu.memory_space<vmem>>, vector<1x24xf32>
      %23 = vector.broadcast %22 : vector<1x24xf32> to vector<200x24xf32>
      %24 = arith.addf %21, %23 : vector<200x24xf32>
      %c0_13 = arith.constant 0 : index
      %c0_14 = arith.constant 0 : index
      %25 = vector.load %arg7[%c0_13, %c0_14] : memref<200x24xf32, #tpu.memory_space<vmem>>, vector<200x24xf32>
      tpu.vector_store %arg7[%c0_13, %c0_14], %24 {strides = array<i32>} : memref<200x24xf32, #tpu.memory_space<vmem>>, vector<200x24xf32>,
    } else {
    }
    return
  }
  func.func @transform_0(%arg0: i32, %arg1: i32) -> (i32, i32) {
    %c1_i32 = arith.constant 1 : i32
    %0 = arith.subi %c1_i32, %arg0 : i32
    %1 = arith.muli %arg1, %0 : i32
    %c0_i32 = arith.constant 0 : i32
    %2 = arith.muli %c0_i32, %arg0 : i32
    %3 = arith.addi %1, %2 : i32
    %c0_i32_0 = arith.constant 0 : i32
    %c0_i32_1 = arith.constant 0 : i32
    return %3, %c0_i32_0 : i32, i32
  }
  func.func @transform_1(%arg0: i32, %arg1: i32) -> (i32, i32) {
    %c0_i32 = arith.constant 0 : i32
    %c0_i32_0 = arith.constant 0 : i32
    %c0_i32_1 = arith.constant 0 : i32
    return %c0_i32, %c0_i32_0 : i32, i32
  }
  func.func @transform_2(%arg0: i32, %arg1: i32) -> (i32, i32) {
    %c0_i32 = arith.constant 0 : i32
    %c0_i32_0 = arith.constant 0 : i32
    %c0_i32_1 = arith.constant 0 : i32
    return %c0_i32, %c0_i32_0 : i32, i32
  }
  func.func @transform_3(%arg0: i32, %arg1: i32) -> (i32, i32) {
    %c0_i32 = arith.constant 0 : i32
    %c0_i32_0 = arith.constant 0 : i32
    %c0_i32_1 = arith.constant 0 : i32
    return %c0_i32, %c0_i32_0 : i32, i32
  }
  func.func @transform_4(%arg0: i32, %arg1: i32) -> (i32, i32) {
    %c0_i32 = arith.constant 0 : i32
    %c0_i32_0 = arith.constant 0 : i32
    %c0_i32_1 = arith.constant 0 : i32
    return %c0_i32, %c0_i32_0 : i32, i32
  }
  func.func @transform_5(%arg0: i32, %arg1: i32) -> (i32, i32) {
    %0 = arith.muli %arg1, %arg0 : i32
    %c0_i32 = arith.constant 0 : i32
    %c0_i32_0 = arith.constant 0 : i32
    return %0, %c0_i32 : i32, i32
  }
}

</mosaic_0001>

<llo_original>
// kernel: tpu_custom_call.1
$region0: #{tpu_custom_call.1}
  #allocation0 [shape = 'u32[]', space=smem, size = 0x4, offset = 0x4, fixed_abs, tag = 'smem constant byte address 0x4 - core index']
  #allocation1 [shape = 'u32[144,128]{1,0:T(1,128)}', space=vmem, size = 0x12000, scoped, tag = 'internal scratch']
  #allocation2 [shape = 'f32[24,24]{1,0:T(8,128)}', space=vmem, size = 0x3000, scoped, tag = 'scratch operand']
  #allocation3 [shape = 'f32[1,200,24]{2,1,0:T(8,128)}', space=vmem, size = 0x19000, scoped, tag = 'scratch operand']
  #allocation4 [shape = 'f32[1,24]{1,0:T(1,128)}', space=vmem, size = 0x200, scoped, tag = 'scratch operand']
  #allocation5 [shape = 'f32[1,24]{1,0:T(1,128)}', space=vmem, size = 0x200, scoped, tag = 'scratch operand']
  #allocation6 [shape = 'f32[1,24]{1,0:T(1,128)}', space=vmem, size = 0x200, scoped, tag = 'scratch operand']
  #allocation7 [shape = 'f32[1,24]{1,0:T(1,128)}', space=vmem, size = 0x200, scoped, tag = 'scratch operand']
  %s0 = inlined_call_operand.vmem [shape: f32[200,24], index: 0, kind: input, shape index: {}]
  %s1 = inlined_call_operand.vmem [shape: f32[24,24], index: 1, kind: input, shape index: {}]
  %s2 = inlined_call_operand.vmem [shape: f32[24,24], index: 2, kind: input, shape index: {}]
  %s3 = inlined_call_operand.vmem [shape: f32[1,24], index: 3, kind: input, shape index: {}]
  %s4 = inlined_call_operand.vmem [shape: f32[1,24], index: 4, kind: input, shape index: {}]
  %s5 = inlined_call_operand.vmem [shape: f32[200,24], index: 5, kind: output, shape index: {}]
  %s6 = sld [smem:[#allocation0]]
  $region69: #{tpu_custom_call.1} parent=0
    _
  %s8 = ssub.s32 1, %s6
  %s9 = scalar_select 0, %s8, %s6
  loop: start=0, step=1, limit=4
  $region2: #{tpu_custom_call.1} parent=0 // loop_pre_header
    _
  $region3: #{tpu_custom_call.1} parent=0 // loop_header
    %s11 = sphi 0, %s15
    %p12 = scmp.ge.s32.totalorder %s11, 4
    %s18 = sphi 0, %s30
    %s19 = sphi 0, %s26
    %s20 = sphi 0, %s18
    %s21 = sphi 0, %s19
    %s22 = sphi 0, %s20
    %s23 = sphi 0, %s21
    %s37 = sphi 0, %s39
    %s40 = sphi 0, %s37
    %s41 = sphi 0, %s40
    %s57 = sphi 0, %s41
    %s61 = sphi 0, %s61
    %s63 = sphi 0, %s61
    %s64 = sphi 0, %s63
    %s78 = sphi 0, %s64
    %s82 = sphi 0, %s82
    %s84 = sphi 0, %s82
    %s85 = sphi 0, %s84
    %s99 = sphi 0, %s85
    %s103 = sphi 0, %s103
    %s105 = sphi 0, %s103
    %s106 = sphi 0, %s105
    %s120 = sphi 0, %s106
    %s124 = sphi 0, %s124
    %s126 = sphi 0, %s124
    %s127 = sphi 0, %s126
    %s141 = sphi 0, %s127
    %s149 = sphi 0, %s151
    %s152 = sphi 0, %s149
    %s153 = sphi 0, %s152
    %s169 = sphi 0, %s153
  $region4: #{tpu_custom_call.1} parent=0 // loop_header_branch
    %14 = sbr.rel (%p12) target = $region8
  $region5: #{tpu_custom_call.1} parent=0 // loop_body
    %s16 = ssub.s32 %s11, 1
    %s17 = ssub.s32 %s11, 2
    %s24 = sadd.s32 1, %s19
    %p25 = scmp.ge.s32.totalorder %s24, 1
    %s26 = scalar_select %p25, 0, %s24
    %s27 = sadd.s32 1, %s18
    %s28 = scalar_select %p25, %s27, %s18
    %p29 = scmp.ge.s32.totalorder %s28, 2
    %s30 = scalar_select %p29, 0, %s28
    %s31 = ssub.s32 1, %s18
    %s32 = smul.u32 %s19, %s31
    %s33 = ssub.s32 1, %s30
    %s34 = smul.u32 %s26, %s33
    %s35 = ssub.s32 %s32, %s34
    %p36 = scmp.eq.s32.totalorder %s35, 0
    %s38 = sadd.s32 %s37, 1
    %s39 = scalar_select %p36, %s37, %s38
    %p42 = pneg %p36
    %p43 = scmp.eq.s32.totalorder %s11, 1
    %p44 = por %p42, %p43
    %p45 = scmp.ne.s32.totalorder %s37, %s40
    %p46 = scmp.eq.s32.totalorder %s11, 0
    %p47 = por %p45, %p46
    %p48 = scmp.ne.s32.totalorder %s37, %s40
    %p49 = scmp.eq.s32.totalorder %s16, 1
    %p50 = por %p48, %p49
    %p51 = scmp.ne.s32.totalorder %s40, %s41
    %p52 = scmp.eq.s32.totalorder %s16, 0
    %p53 = por %p51, %p52
    %p54 = scmp.ne.s32.totalorder %s40, %s41
    %p55 = scmp.eq.s32.totalorder %s17, 1
    %p56 = por %p54, %p55
    %p58 = scmp.ne.s32.totalorder %s41, %s57
    %p59 = scmp.eq.s32.totalorder %s17, 0
    %p60 = por %p58, %p59
    %s62 = sadd.s32 %s61, 1
    %p65 = scmp.eq.s32.totalorder %s11, 1
    %p66 = scmp.ne.s32.totalorder %s61, %s63
    %p67 = scmp.eq.s32.totalorder %s11, 0
    %p68 = por %p66, %p67
    %p69 = scmp.ne.s32.totalorder %s61, %s63
    %p70 = scmp.eq.s32.totalorder %s16, 1
    %p71 = por %p69, %p70
    %p72 = scmp.ne.s32.totalorder %s63, %s64
    %p73 = scmp.eq.s32.totalorder %s16, 0
    %p74 = por %p72, %p73
    %p75 = scmp.ne.s32.totalorder %s63, %s64
    %p76 = scmp.eq.s32.totalorder %s17, 1
    %p77 = por %p75, %p76
    %p79 = scmp.ne.s32.totalorder %s64, %s78
    %p80 = scmp.eq.s32.totalorder %s17, 0
    %p81 = por %p79, %p80
    %s83 = sadd.s32 %s82, 1
    %p86 = scmp.eq.s32.totalorder %s11, 1
    %p87 = scmp.ne.s32.totalorder %s82, %s84
    %p88 = scmp.eq.s32.totalorder %s11, 0
    %p89 = por %p87, %p88
    %p90 = scmp.ne.s32.totalorder %s82, %s84
    %p91 = scmp.eq.s32.totalorder %s16, 1
    %p92 = por %p90, %p91
    %p93 = scmp.ne.s32.totalorder %s84, %s85
    %p94 = scmp.eq.s32.totalorder %s16, 0
    %p95 = por %p93, %p94
    %p96 = scmp.ne.s32.totalorder %s84, %s85
    %p97 = scmp.eq.s32.totalorder %s17, 1
    %p98 = por %p96, %p97
    %p100 = scmp.ne.s32.totalorder %s85, %s99
    %p101 = scmp.eq.s32.totalorder %s17, 0
    %p102 = por %p100, %p101
    %s104 = sadd.s32 %s103, 1
    %p107 = scmp.eq.s32.totalorder %s11, 1
    %p108 = scmp.ne.s32.totalorder %s103, %s105
    %p109 = scmp.eq.s32.totalorder %s11, 0
    %p110 = por %p108, %p109
    %p111 = scmp.ne.s32.totalorder %s103, %s105
    %p112 = scmp.eq.s32.totalorder %s16, 1
    %p113 = por %p111, %p112
    %p114 = scmp.ne.s32.totalorder %s105, %s106
    %p115 = scmp.eq.s32.totalorder %s16, 0
    %p116 = por %p114, %p115
    %p117 = scmp.ne.s32.totalorder %s105, %s106
    %p118 = scmp.eq.s32.totalorder %s17, 1
    %p119 = por %p117, %p118
    %p121 = scmp.ne.s32.totalorder %s106, %s120
    %p122 = scmp.eq.s32.totalorder %s17, 0
    %p123 = por %p121, %p122
    %s125 = sadd.s32 %s124, 1
    %p128 = scmp.eq.s32.totalorder %s11, 1
    %p129 = scmp.ne.s32.totalorder %s124, %s126
    %p130 = scmp.eq.s32.totalorder %s11, 0
    %p131 = por %p129, %p130
    %p132 = scmp.ne.s32.totalorder %s124, %s126
    %p133 = scmp.eq.s32.totalorder %s16, 1
    %p134 = por %p132, %p133
    %p135 = scmp.ne.s32.totalorder %s126, %s127
    %p136 = scmp.eq.s32.totalorder %s16, 0
    %p137 = por %p135, %p136
    %p138 = scmp.ne.s32.totalorder %s126, %s127
    %p139 = scmp.eq.s32.totalorder %s17, 1
    %p140 = por %p138, %p139
    %p142 = scmp.ne.s32.totalorder %s127, %s141
    %p143 = scmp.eq.s32.totalorder %s17, 0
    %p144 = por %p142, %p143
    %s145 = smul.u32 %s19, %s18
    %s146 = smul.u32 %s26, %s30
    %s147 = ssub.s32 %s145, %s146
    %p148 = scmp.eq.s32.totalorder %s147, 0
    %s150 = sadd.s32 %s149, 1
    %s151 = scalar_select %p148, %s149, %s150
    %p154 = pneg %p148
    %p155 = scmp.eq.s32.totalorder %s11, 1
    %p156 = por %p154, %p155
    %p157 = scmp.ne.s32.totalorder %s149, %s152
    %p158 = scmp.eq.s32.totalorder %s11, 0
    %p159 = por %p157, %p158
    %p160 = scmp.ne.s32.totalorder %s149, %s152
    %p161 = scmp.eq.s32.totalorder %s16, 1
    %p162 = por %p160, %p161
    %p163 = scmp.ne.s32.totalorder %s152, %s153
    %p164 = scmp.eq.s32.totalorder %s16, 0
    %p165 = por %p163, %p164
    %p166 = scmp.ne.s32.totalorder %s152, %s153
    %p167 = scmp.eq.s32.totalorder %s17, 1
    %p168 = por %p166, %p167
    %p170 = scmp.ne.s32.totalorder %s153, %s169
    %p171 = scmp.eq.s32.totalorder %s17, 0
    %p172 = por %p170, %p171
    %p173 = scmp.le.s32.totalorder 1, %s11
    %p174 = scmp.lt.s32.totalorder %s11, 3
    %p175 = pnand %p173, %p174
    %p176 = pneg %p175
    // Predicated region
    $region9: #{tpu_custom_call.1} parent=5 // pred_check
      _
    $region10: #{tpu_custom_call.1} parent=5 // pred_check_branch
      %178 = sbr.rel (%p175) target = $region12
    $region11: #{tpu_custom_call.1} parent=5 // pred_region
      %s179 = ssub.s32 %s11, 1
      // Predicated region
      $region13: #{tpu_custom_call.1} parent=11 // pred_check
        %p180 = pneg %p74
      $region14: #{tpu_custom_call.1} parent=11 // pred_check_branch
        %182 = sbr.rel (%p180) target = $region16
      $region15: #{tpu_custom_call.1} parent=11 // pred_region
        _
      $region16: #{tpu_custom_call.1} parent=11 // pred_fallthru
        _
      // Predicated region
      $region17: #{tpu_custom_call.1} parent=11 // pred_check
        %p183 = pneg %p95
      $region18: #{tpu_custom_call.1} parent=11 // pred_check_branch
        %185 = sbr.rel (%p183) target = $region20
      $region19: #{tpu_custom_call.1} parent=11 // pred_region
        _
      $region20: #{tpu_custom_call.1} parent=11 // pred_fallthru
        _
      // Predicated region
      $region21: #{tpu_custom_call.1} parent=11 // pred_check
        %p186 = pneg %p116
      $region22: #{tpu_custom_call.1} parent=11 // pred_check_branch
        %188 = sbr.rel (%p186) target = $region24
      $region23: #{tpu_custom_call.1} parent=11 // pred_region
        _
      $region24: #{tpu_custom_call.1} parent=11 // pred_fallthru
        _
      // Predicated region
      $region25: #{tpu_custom_call.1} parent=11 // pred_check
        %p189 = pneg %p137
      $region26: #{tpu_custom_call.1} parent=11 // pred_check_branch
        %191 = sbr.rel (%p189) target = $region28
      $region27: #{tpu_custom_call.1} parent=11 // pred_region
        _
      $region28: #{tpu_custom_call.1} parent=11 // pred_fallthru
        _
    $region12: #{tpu_custom_call.1} parent=5 // pred_fallthru
      _
    %p192 = scmp.lt.s32.totalorder %s11, 2
    // Predicated region
    $region29: #{tpu_custom_call.1} parent=5 // pred_check
      %p193 = pneg %p192
    $region30: #{tpu_custom_call.1} parent=5 // pred_check_branch
      %195 = sbr.rel (%p193) target = $region32
    $region31: #{tpu_custom_call.1} parent=5 // pred_region
      // Predicated region
      $region33: #{tpu_custom_call.1} parent=31 // pred_check
        %p196 = pneg %p47
      $region34: #{tpu_custom_call.1} parent=31 // pred_check_branch
        %198 = sbr.rel (%p196) target = $region36
      $region35: #{tpu_custom_call.1} parent=31 // pred_region
        %s199 = ssub.s32 1, %s18
        %s200 = smul.u32 %s19, %s199
        %s201 = smul.u32 25, %s200
        %p202 = scmp.lt.s32.totalorder %s201, 24
        %s203 = scalar_select %p202, %s201, 24
        %s204 = smul.addr %s203, 8
        %s205 = scalar_lea.vmem %s0, %s204
        %s206 = ssub.s32 1, %s18
        %s207 = smul.u32 %s19, %s206
        %s208 = smul.u32 25, %s207
      $region36: #{tpu_custom_call.1} parent=31 // pred_fallthru
        _
    $region32: #{tpu_custom_call.1} parent=5 // pred_fallthru
      _
    %p209 = scmp.le.s32.totalorder 1, %s11
    %p210 = scmp.lt.s32.totalorder %s11, 3
    %p211 = pnand %p209, %p210
    %p212 = pneg %p211
    // Predicated region
    $region37: #{tpu_custom_call.1} parent=5 // pred_check
      _
    $region38: #{tpu_custom_call.1} parent=5 // pred_check_branch
      %214 = sbr.rel (%p211) target = $region40
    $region39: #{tpu_custom_call.1} parent=5 // pred_region
      %s215 = ssub.s32 %s11, 1
      %s216 = ssub.s32 1, %s20
      %s217 = smul.u32 %s21, %s216
      %s218 = smul.u32 25, %s217
      %p219 = scmp.lt.s32.totalorder %s218, 24
      %s220 = scalar_select %p219, %s218, 24
      %s221 = smul.addr %s220, 8
      %s222 = scalar_lea.vmem %s0, %s221
      %p223 = pneg %p53
      %p224 = pneg %p50
      %p225 = pneg %p74
      %p226 = pneg %p71
      %p227 = pneg %p95
      %p228 = pneg %p92
      %p229 = pneg %p116
      %p230 = pneg %p113
      %p231 = pneg %p137
      %p232 = pneg %p134
      %p233 = pneg %p165
      %p234 = pneg %p162
      %s235 = smul.u32 %s21, %s20
      %s236 = smul.u32 25, %s235
      %p237 = scmp.lt.s32.totalorder %s236, 24
      %s238 = scalar_select %p237, %s236, 24
      %s239 = smul.addr %s238, 8
      %s240 = scalar_lea.vmem %s5, %s239
      %s241 = ssub.s32 1, %s20
      %s242 = smul.u32 %s21, %s241
      %s243 = smul.u32 25, %s242
      %p244 = scmp.lt.s32.totalorder %s243, 24
      %s245 = scalar_select %p244, %s243, 24
      %s246 = smul.addr %s245, 8
      %s247 = scalar_lea.vmem %s0, %s246
      %s248 = ssub.s32 1, %s20
      %s249 = smul.u32 %s21, %s248
      %s250 = smul.u32 25, %s249
      %s251 = smul.u32 %s21, %s20
      %s252 = smul.u32 25, %s251
      %p253 = scmp.lt.s32.totalorder %s252, 24
      %s254 = scalar_select %p253, %s252, 24
      %s255 = smul.addr %s254, 8
      %s256 = scalar_lea.vmem %s5, %s255
      %s257 = smul.u32 %s21, %s20
      %s258 = smul.u32 25, %s257
      %p259 = scmp.eq.s32.totalorder %s20, 0
      %p260 = scmp.eq.s32.totalorder %s21, 0
      %p261 = pnand %p259, %p260
      %p262 = pneg %p261
      // Predicated region
      $region41: #{tpu_custom_call.1} parent=39 // pred_check
        _
      $region42: #{tpu_custom_call.1} parent=39 // pred_check_branch
        %264 = sbr.rel (%p261) target = $region44
      $region43: #{tpu_custom_call.1} parent=39 // pred_region
        %v265 = vld [vmem:[%s1] sm:$0xff]
        %v266 = vld [vmem:[%s1 + $0x8] sm:$0xff]
        %v267 = vld [vmem:[%s1 + $0x10] sm:$0xff]
        %v268 = vld [vmem:[%s2] sm:$0xff]
        %v269 = vld [vmem:[%s2 + $0x8] sm:$0xff]
        %v270 = vld [vmem:[%s2 + $0x10] sm:$0xff]
        %271 = vxpose.xlu0.b32.start [1/16] %v265, 128
        %272 = vxpose.xlu0.b32.cont [2/16] %v266, 128
        %273 = vxpose.xlu0.b32.cont [3/16] %v267, 128
        %274 = vxpose.xlu0.b32.cont [4/16] 0.0, 128
        %275 = vxpose.xlu0.b32.cont [5/16] 0.0, 128
        %276 = vxpose.xlu0.b32.cont [6/16] 0.0, 128
        %277 = vxpose.xlu0.b32.cont [7/16] 0.0, 128
        %278 = vxpose.xlu0.b32.cont [8/16] 0.0, 128
        %279 = vxpose.xlu0.b32.cont [9/16] 0.0, 128
        %280 = vxpose.xlu0.b32.cont [10/16] 0.0, 128
        %281 = vxpose.xlu0.b32.cont [11/16] 0.0, 128
        %282 = vxpose.xlu0.b32.cont [12/16] 0.0, 128
        %283 = vxpose.xlu0.b32.cont [13/16] 0.0, 128
        %284 = vxpose.xlu0.b32.cont [14/16] 0.0, 128
        %285 = vxpose.xlu0.b32.cont [15/16] 0.0, 128
        %286 = vxpose.xlu0.b32.end [16/16] 0.0, 128
        %v287 = vpop.trf.xlu0
        %v288 = vpop.trf.xlu0
        %v289 = vpop.trf.xlu0
        %v290 = vpop.trf.xlu0
        %v291 = vpop.trf.xlu0
        %v292 = vpop.trf.xlu0
        %v293 = vpop.trf.xlu0
        %v294 = vpop.trf.xlu0
        %v295 = vpop.trf.xlu0
        %v296 = vpop.trf.xlu0
        %v297 = vpop.trf.xlu0
        %v298 = vpop.trf.xlu0
        %v299 = vpop.trf.xlu0
        %v300 = vpop.trf.xlu0
        %v301 = vpop.trf.xlu0
        %v302 = vpop.trf.xlu0
        %vm303 = vcmask 195584
        %v305 = vsel %vm303, %v287, 0
        %v308 = vsel %vm303, %v288, 0
        %v311 = vsel %vm303, %v289, 0
        %313 = vmatprep.subr.mxu0 0.0
        %314 = vmatpush1.msra.mxu0 %v268
        %315 = vmatprep.subr.mxu0 0.0
        %316 = vmatpush1.msra.mxu0 %v269
        %317 = vmatprep.subr.mxu0 0.0
        %318 = vmatpush1.msra.mxu0 %v270
        %319 = vmatprep.subr.mxu0 0.0
        %320 = vmatpush1.msra.mxu0 0.0
        %321 = vmatprep.subr.mxu0 0.0
        %322 = vmatpush1.msra.mxu0 0.0
        %323 = vmatprep.subr.mxu0 0.0
        %324 = vmatpush1.msra.mxu0 0.0
        %325 = vmatprep.subr.mxu0 0.0
        %326 = vmatpush1.msra.mxu0 0.0
        %327 = vmatprep.subr.mxu0 0.0
        %328 = vmatpush1.msra.mxu0 0.0
        %329 = vmatprep.subr.mxu0 0.0
        %330 = vmatpush1.msra.mxu0 0.0
        %331 = vmatprep.subr.mxu0 0.0
        %332 = vmatpush1.msra.mxu0 0.0
        %333 = vmatprep.subr.mxu0 0.0
        %334 = vmatpush1.msra.mxu0 0.0
        %335 = vmatprep.subr.mxu0 0.0
        %336 = vmatpush1.msra.mxu0 0.0
        %337 = vmatprep.subr.mxu0 0.0
        %338 = vmatpush1.msra.mxu0 0.0
        %339 = vmatprep.subr.mxu0 0.0
        %340 = vmatpush1.msra.mxu0 0.0
        %341 = vmatprep.subr.mxu0 0.0
        %342 = vmatpush1.msra.mxu0 0.0
        %343 = vmatprep.subr.mxu0 0.0
        %344 = vmatpush1.msra.mxu0 0.0
        %345 = vmatprep.subr.mxu0 0.0
        %346 = vmatpush1.msra.mxu0 0.0
        %347 = vmatprep.subr.mxu0 0.0
        %348 = vmatpush1.msra.mxu0 0.0
        %349 = vmatprep.subr.mxu0 0.0
        %350 = vmatpush1.msra.mxu0 0.0
        %351 = vmatprep.subr.mxu0 0.0
        %352 = vmatpush1.msra.mxu0 0.0
        %353 = vmatprep.subr.mxu0 0.0
        %354 = vmatpush1.msra.mxu0 0.0
        %355 = vmatprep.subr.mxu0 0.0
        %356 = vmatpush1.msra.mxu0 0.0
        %357 = vmatprep.subr.mxu0 0.0
        %358 = vmatpush1.msra.mxu0 0.0
        %359 = vmatprep.subr.mxu0 0.0
        %360 = vmatpush1.msra.mxu0 0.0
        %361 = vmatprep.subr.mxu0 0.0
        %362 = vmatpush1.msra.mxu0 0.0
        %363 = vmatprep.subr.mxu0 0.0
        %364 = vmatpush1.msra.mxu0 0.0
        %365 = vmatprep.subr.mxu0 0.0
        %366 = vmatpush1.msra.mxu0 0.0
        %367 = vmatprep.subr.mxu0 0.0
        %368 = vmatpush1.msra.mxu0 0.0
        %369 = vmatprep.subr.mxu0 0.0
        %370 = vmatpush1.msra.mxu0 0.0
        %371 = vmatprep.subr.mxu0 0.0
        %372 = vmatpush1.msra.mxu0 0.0
        %373 = vmatprep.subr.mxu0 0.0
        %374 = vmatpush1.msra.mxu0 0.0
        %375 = vmatprep.subr.mxu0 0.0
        %376 = vmatpush1.msra.mxu0 0.0
        %377 = vmatprep.mubr.f32.mxu0 0.0
        %378 = vmatmul.mubr.f32.gmra.mrb[0].mxu0 %v305
        %v379 = vpop.f32.mrb[0].mxu0
        %v380 = vadd.f32 0.0, %v379
        %v381 = vpop.f32.mrb[0].mxu0
        %382 = vmatprep.mubr.f32.mxu0 0.0
        %383 = vmatmul.mubr.f32.gmra.mrb[0].mxu0 %v308
        %v384 = vpop.f32.mrb[0].mxu0
        %v385 = vadd.f32 0.0, %v384
        %v386 = vpop.f32.mrb[0].mxu0
        %387 = vmatprep.mubr.f32.mxu0 0.0
        %388 = vmatmul.mubr.f32.gmra.mrb[0].mxu0 %v311
        %v389 = vpop.f32.mrb[0].mxu0
        %v390 = vadd.f32 0.0, %v389
        %v391 = vpop.f32.mrb[0].mxu0
        %392 = vdwg.mxu0
        %393 = vst.msk [vmem:[#allocation2] sm:$0xff] %vm303, %v380
        %394 = vst.msk [vmem:[#allocation2 + $0x8] sm:$0xff] %vm303, %v385
        %395 = vst.msk [vmem:[#allocation2 + $0x10] sm:$0xff] %vm303, %v390
        %vm396 = vcmask 188416
        %397 = vst.msk [vmem:[#allocation4] sm:$0x1] %vm396, 0.0
        %398 = vst.msk [vmem:[#allocation5] sm:$0x1] %vm396, 0.0
      $region44: #{tpu_custom_call.1} parent=39 // pred_fallthru
        _
      // Predicated region
      $region45: #{tpu_custom_call.1} parent=39 // pred_check
        %p399 = pneg %p259
      $region46: #{tpu_custom_call.1} parent=39 // pred_check_branch
        %401 = sbr.rel (%p399) target = $region48
      $region47: #{tpu_custom_call.1} parent=39 // pred_region
        %v402 = vld [vmem:[%s247] sm:$0xff]
        %v403 = vld [vmem:[%s247 + $0x8] sm:$0xff]
        %v404 = vld [vmem:[%s247 + $0x10] sm:$0xff]
        %v405 = vld [vmem:[%s247 + $0x18] sm:$0xff]
        %v406 = vld [vmem:[%s247 + $0x20] sm:$0xff]
        %v407 = vld [vmem:[%s247 + $0x28] sm:$0xff]
        %v408 = vld [vmem:[%s247 + $0x30] sm:$0xff]
        %v409 = vld [vmem:[%s247 + $0x38] sm:$0xff]
        %v410 = vld [vmem:[%s247 + $0x40] sm:$0xff]
        %v411 = vld [vmem:[%s247 + $0x48] sm:$0xff]
        %v412 = vld [vmem:[%s247 + $0x50] sm:$0xff]
        %v413 = vld [vmem:[%s247 + $0x58] sm:$0xff]
        %v414 = vld [vmem:[%s247 + $0x60] sm:$0xff]
        %v415 = vld [vmem:[%s247 + $0x68] sm:$0xff]
        %v416 = vld [vmem:[%s247 + $0x70] sm:$0xff]
        %v417 = vld [vmem:[%s247 + $0x78] sm:$0xff]
        %v418 = vld [vmem:[%s247 + $0x80] sm:$0xff]
        %v419 = vld [vmem:[%s247 + $0x88] sm:$0xff]
        %v420 = vld [vmem:[%s247 + $0x90] sm:$0xff]
        %v421 = vld [vmem:[%s247 + $0x98] sm:$0xff]
        %v422 = vld [vmem:[%s247 + $0xa0] sm:$0xff]
        %v423 = vld [vmem:[%s247 + $0xa8] sm:$0xff]
        %v424 = vld [vmem:[%s247 + $0xb0] sm:$0xff]
        %v425 = vld [vmem:[%s247 + $0xb8] sm:$0xff]
        %v426 = vld [vmem:[%s247 + $0xc0] sm:$0xff]
        %v427 = vld [vmem:[#allocation2] sm:$0xff]
        %v428 = vld [vmem:[#allocation2 + $0x8] sm:$0xff]
        %v429 = vld [vmem:[#allocation2 + $0x10] sm:$0xff]
        %vm430 = vcmask 195584
        %v432 = vsel %vm430, %v402, 0
        %v435 = vsel %vm430, %v403, 0
        %v438 = vsel %vm430, %v404, 0
        %v441 = vsel %vm430, %v405, 0
        %v444 = vsel %vm430, %v406, 0
        %v447 = vsel %vm430, %v407, 0
        %v450 = vsel %vm430, %v408, 0
        %v453 = vsel %vm430, %v409, 0
        %v456 = vsel %vm430, %v410, 0
        %v459 = vsel %vm430, %v411, 0
        %v462 = vsel %vm430, %v412, 0
        %v465 = vsel %vm430, %v413, 0
        %v468 = vsel %vm430, %v414, 0
        %v471 = vsel %vm430, %v415, 0
        %v474 = vsel %vm430, %v416, 0
        %v477 = vsel %vm430, %v417, 0
        %v480 = vsel %vm430, %v418, 0
        %v483 = vsel %vm430, %v419, 0
        %v486 = vsel %vm430, %v420, 0
        %v489 = vsel %vm430, %v421, 0
        %v492 = vsel %vm430, %v422, 0
        %v495 = vsel %vm430, %v423, 0
        %v498 = vsel %vm430, %v424, 0
        %v501 = vsel %vm430, %v425, 0
        %v504 = vsel %vm430, %v426, 0
        %506 = vmatprep.subr.mxu0 0.0
        %507 = vmatpush1.msra.mxu0 %v427
        %508 = vmatprep.subr.mxu0 0.0
        %509 = vmatpush1.msra.mxu0 %v428
        %510 = vmatprep.subr.mxu0 0.0
        %511 = vmatpush1.msra.mxu0 %v429
        %512 = vmatprep.subr.mxu0 0.0
        %513 = vmatpush1.msra.mxu0 0.0
        %514 = vmatprep.subr.mxu0 0.0
        %515 = vmatpush1.msra.mxu0 0.0
        %516 = vmatprep.subr.mxu0 0.0
        %517 = vmatpush1.msra.mxu0 0.0
        %518 = vmatprep.subr.mxu0 0.0
        %519 = vmatpush1.msra.mxu0 0.0
        %520 = vmatprep.subr.mxu0 0.0
        %521 = vmatpush1.msra.mxu0 0.0
        %522 = vmatprep.subr.mxu0 0.0
        %523 = vmatpush1.msra.mxu0 0.0
        %524 = vmatprep.subr.mxu0 0.0
        %525 = vmatpush1.msra.mxu0 0.0
        %526 = vmatprep.subr.mxu0 0.0
        %527 = vmatpush1.msra.mxu0 0.0
        %528 = vmatprep.subr.mxu0 0.0
        %529 = vmatpush1.msra.mxu0 0.0
        %530 = vmatprep.subr.mxu0 0.0
        %531 = vmatpush1.msra.mxu0 0.0
        %532 = vmatprep.subr.mxu0 0.0
        %533 = vmatpush1.msra.mxu0 0.0
        %534 = vmatprep.subr.mxu0 0.0
        %535 = vmatpush1.msra.mxu0 0.0
        %536 = vmatprep.subr.mxu0 0.0
        %537 = vmatpush1.msra.mxu0 0.0
        %538 = vmatprep.subr.mxu0 0.0
        %539 = vmatpush1.msra.mxu0 0.0
        %540 = vmatprep.subr.mxu0 0.0
        %541 = vmatpush1.msra.mxu0 0.0
        %542 = vmatprep.subr.mxu0 0.0
        %543 = vmatpush1.msra.mxu0 0.0
        %544 = vmatprep.subr.mxu0 0.0
        %545 = vmatpush1.msra.mxu0 0.0
        %546 = vmatprep.subr.mxu0 0.0
        %547 = vmatpush1.msra.mxu0 0.0
        %548 = vmatprep.subr.mxu0 0.0
        %549 = vmatpush1.msra.mxu0 0.0
        %550 = vmatprep.subr.mxu0 0.0
        %551 = vmatpush1.msra.mxu0 0.0
        %552 = vmatprep.subr.mxu0 0.0
        %553 = vmatpush1.msra.mxu0 0.0
        %554 = vmatprep.subr.mxu0 0.0
        %555 = vmatpush1.msra.mxu0 0.0
        %556 = vmatprep.subr.mxu0 0.0
        %557 = vmatpush1.msra.mxu0 0.0
        %558 = vmatprep.subr.mxu0 0.0
        %559 = vmatpush1.msra.mxu0 0.0
        %560 = vmatprep.subr.mxu0 0.0
        %561 = vmatpush1.msra.mxu0 0.0
        %562 = vmatprep.subr.mxu0 0.0
        %563 = vmatpush1.msra.mxu0 0.0
        %564 = vmatprep.subr.mxu0 0.0
        %565 = vmatpush1.msra.mxu0 0.0
        %566 = vmatprep.subr.mxu0 0.0
        %567 = vmatpush1.msra.mxu0 0.0
        %568 = vmatprep.subr.mxu0 0.0
        %569 = vmatpush1.msra.mxu0 0.0
        %570 = vmatprep.mubr.f32.mxu0 0.0
        %571 = vmatmul.mubr.f32.gmra.mrb[0].mxu0 %v432
        %v572 = vpop.f32.mrb[0].mxu0
        %v573 = vadd.f32 0.0, %v572
        %v574 = vpop.f32.mrb[0].mxu0
        %575 = vmatprep.mubr.f32.mxu0 0.0
        %576 = vmatmul.mubr.f32.gmra.mrb[0].mxu0 %v435
        %v577 = vpop.f32.mrb[0].mxu0
        %v578 = vadd.f32 0.0, %v577
        %v579 = vpop.f32.mrb[0].mxu0
        %580 = vmatprep.mubr.f32.mxu0 0.0
        %581 = vmatmul.mubr.f32.gmra.mrb[0].mxu0 %v438
        %v582 = vpop.f32.mrb[0].mxu0
        %v583 = vadd.f32 0.0, %v582
        %v584 = vpop.f32.mrb[0].mxu0
        %585 = vmatprep.mubr.f32.mxu0 0.0
        %586 = vmatmul.mubr.f32.gmra.mrb[0].mxu0 %v441
        %v587 = vpop.f32.mrb[0].mxu0
        %v588 = vadd.f32 0.0, %v587
        %v589 = vpop.f32.mrb[0].mxu0
        %590 = vmatprep.mubr.f32.mxu0 0.0
        %591 = vmatmul.mubr.f32.gmra.mrb[0].mxu0 %v444
        %v592 = vpop.f32.mrb[0].mxu0
        %v593 = vadd.f32 0.0, %v592
        %v594 = vpop.f32.mrb[0].mxu0
        %595 = vmatprep.mubr.f32.mxu0 0.0
        %596 = vmatmul.mubr.f32.gmra.mrb[0].mxu0 %v447
        %v597 = vpop.f32.mrb[0].mxu0
        %v598 = vadd.f32 0.0, %v597
        %v599 = vpop.f32.mrb[0].mxu0
        %600 = vmatprep.mubr.f32.mxu0 0.0
        %601 = vmatmul.mubr.f32.gmra.mrb[0].mxu0 %v450
        %v602 = vpop.f32.mrb[0].mxu0
        %v603 = vadd.f32 0.0, %v602
        %v604 = vpop.f32.mrb[0].mxu0
        %605 = vmatprep.mubr.f32.mxu0 0.0
        %606 = vmatmul.mubr.f32.gmra.mrb[0].mxu0 %v453
        %v607 = vpop.f32.mrb[0].mxu0
        %v608 = vadd.f32 0.0, %v607
        %v609 = vpop.f32.mrb[0].mxu0
        %610 = vmatprep.mubr.f32.mxu0 0.0
        %611 = vmatmul.mubr.f32.gmra.mrb[0].mxu0 %v456
        %v612 = vpop.f32.mrb[0].mxu0
        %v613 = vadd.f32 0.0, %v612
        %v614 = vpop.f32.mrb[0].mxu0
        %615 = vmatprep.mubr.f32.mxu0 0.0
        %616 = vmatmul.mubr.f32.gmra.mrb[0].mxu0 %v459
        %v617 = vpop.f32.mrb[0].mxu0
        %v618 = vadd.f32 0.0, %v617
        %v619 = vpop.f32.mrb[0].mxu0
        %620 = vmatprep.mubr.f32.mxu0 0.0
        %621 = vmatmul.mubr.f32.gmra.mrb[0].mxu0 %v462
        %v622 = vpop.f32.mrb[0].mxu0
        %v623 = vadd.f32 0.0, %v622
        %v624 = vpop.f32.mrb[0].mxu0
        %625 = vmatprep.mubr.f32.mxu0 0.0
        %626 = vmatmul.mubr.f32.gmra.mrb[0].mxu0 %v465
        %v627 = vpop.f32.mrb[0].mxu0
        %v628 = vadd.f32 0.0, %v627
        %v629 = vpop.f32.mrb[0].mxu0
        %630 = vmatprep.mubr.f32.mxu0 0.0
        %631 = vmatmul.mubr.f32.gmra.mrb[0].mxu0 %v468
        %v632 = vpop.f32.mrb[0].mxu0
        %v633 = vadd.f32 0.0, %v632
        %v634 = vpop.f32.mrb[0].mxu0
        %635 = vmatprep.mubr.f32.mxu0 0.0
        %636 = vmatmul.mubr.f32.gmra.mrb[0].mxu0 %v471
        %v637 = vpop.f32.mrb[0].mxu0
        %v638 = vadd.f32 0.0, %v637
        %v639 = vpop.f32.mrb[0].mxu0
        %640 = vmatprep.mubr.f32.mxu0 0.0
        %641 = vmatmul.mubr.f32.gmra.mrb[0].mxu0 %v474
        %v642 = vpop.f32.mrb[0].mxu0
        %v643 = vadd.f32 0.0, %v642
        %v644 = vpop.f32.mrb[0].mxu0
        %645 = vmatprep.mubr.f32.mxu0 0.0
        %646 = vmatmul.mubr.f32.gmra.mrb[0].mxu0 %v477
        %v647 = vpop.f32.mrb[0].mxu0
        %v648 = vadd.f32 0.0, %v647
        %v649 = vpop.f32.mrb[0].mxu0
        %650 = vmatprep.mubr.f32.mxu0 0.0
        %651 = vmatmul.mubr.f32.gmra.mrb[0].mxu0 %v480
        %v652 = vpop.f32.mrb[0].mxu0
        %v653 = vadd.f32 0.0, %v652
        %v654 = vpop.f32.mrb[0].mxu0
        %655 = vmatprep.mubr.f32.mxu0 0.0
        %656 = vmatmul.mubr.f32.gmra.mrb[0].mxu0 %v483
        %v657 = vpop.f32.mrb[0].mxu0
        %v658 = vadd.f32 0.0, %v657
        %v659 = vpop.f32.mrb[0].mxu0
        %660 = vmatprep.mubr.f32.mxu0 0.0
        %661 = vmatmul.mubr.f32.gmra.mrb[0].mxu0 %v486
        %v662 = vpop.f32.mrb[0].mxu0
        %v663 = vadd.f32 0.0, %v662
        %v664 = vpop.f32.mrb[0].mxu0
        %665 = vmatprep.mubr.f32.mxu0 0.0
        %666 = vmatmul.mubr.f32.gmra.mrb[0].mxu0 %v489
        %v667 = vpop.f32.mrb[0].mxu0
        %v668 = vadd.f32 0.0, %v667
        %v669 = vpop.f32.mrb[0].mxu0
        %670 = vmatprep.mubr.f32.mxu0 0.0
        %671 = vmatmul.mubr.f32.gmra.mrb[0].mxu0 %v492
        %v672 = vpop.f32.mrb[0].mxu0
        %v673 = vadd.f32 0.0, %v672
        %v674 = vpop.f32.mrb[0].mxu0
        %675 = vmatprep.mubr.f32.mxu0 0.0
        %676 = vmatmul.mubr.f32.gmra.mrb[0].mxu0 %v495
        %v677 = vpop.f32.mrb[0].mxu0
        %v678 = vadd.f32 0.0, %v677
        %v679 = vpop.f32.mrb[0].mxu0
        %680 = vmatprep.mubr.f32.mxu0 0.0
        %681 = vmatmul.mubr.f32.gmra.mrb[0].mxu0 %v498
        %v682 = vpop.f32.mrb[0].mxu0
        %v683 = vadd.f32 0.0, %v682
        %v684 = vpop.f32.mrb[0].mxu0
        %685 = vmatprep.mubr.f32.mxu0 0.0
        %686 = vmatmul.mubr.f32.gmra.mrb[0].mxu0 %v501
        %v687 = vpop.f32.mrb[0].mxu0
        %v688 = vadd.f32 0.0, %v687
        %v689 = vpop.f32.mrb[0].mxu0
        %690 = vmatprep.mubr.f32.mxu0 0.0
        %691 = vmatmul.mubr.f32.gmra.mrb[0].mxu0 %v504
        %v692 = vpop.f32.mrb[0].mxu0
        %v693 = vadd.f32 0.0, %v692
        %v694 = vpop.f32.mrb[0].mxu0
        %695 = vdwg.mxu0
        %v696 = vmax.f32 %v573, 0.0
        %v697 = vmax.f32 %v578, 0.0
        %v698 = vmax.f32 %v583, 0.0
        %v699 = vmax.f32 %v588, 0.0
        %v700 = vmax.f32 %v593, 0.0
        %v701 = vmax.f32 %v598, 0.0
        %v702 = vmax.f32 %v603, 0.0
        %v703 = vmax.f32 %v608, 0.0
        %v704 = vmax.f32 %v613, 0.0
        %v705 = vmax.f32 %v618, 0.0
        %v706 = vmax.f32 %v623, 0.0
        %v707 = vmax.f32 %v628, 0.0
        %v708 = vmax.f32 %v633, 0.0
        %v709 = vmax.f32 %v638, 0.0
        %v710 = vmax.f32 %v643, 0.0
        %v711 = vmax.f32 %v648, 0.0
        %v712 = vmax.f32 %v653, 0.0
        %v713 = vmax.f32 %v658, 0.0
        %v714 = vmax.f32 %v663, 0.0
        %v715 = vmax.f32 %v668, 0.0
        %v716 = vmax.f32 %v673, 0.0
        %v717 = vmax.f32 %v678, 0.0
        %v718 = vmax.f32 %v683, 0.0
        %v719 = vmax.f32 %v688, 0.0
        %v720 = vmax.f32 %v693, 0.0
        %s721 = smul.u32 %s21, 200
        %s722 = scalar_lea.vmem [#allocation3], %s721
        %723 = vst.msk [vmem:[%s722] sm:$0xff] %vm430, %v696
        %724 = vst.msk [vmem:[%s722 + $0x8] sm:$0xff] %vm430, %v697
        %725 = vst.msk [vmem:[%s722 + $0x10] sm:$0xff] %vm430, %v698
        %726 = vst.msk [vmem:[%s722 + $0x18] sm:$0xff] %vm430, %v699
        %727 = vst.msk [vmem:[%s722 + $0x20] sm:$0xff] %vm430, %v700
        %728 = vst.msk [vmem:[%s722 + $0x28] sm:$0xff] %vm430, %v701
        %729 = vst.msk [vmem:[%s722 + $0x30] sm:$0xff] %vm430, %v702
        %730 = vst.msk [vmem:[%s722 + $0x38] sm:$0xff] %vm430, %v703
        %731 = vst.msk [vmem:[%s722 + $0x40] sm:$0xff] %vm430, %v704
        %732 = vst.msk [vmem:[%s722 + $0x48] sm:$0xff] %vm430, %v705
        %733 = vst.msk [vmem:[%s722 + $0x50] sm:$0xff] %vm430, %v706
        %734 = vst.msk [vmem:[%s722 + $0x58] sm:$0xff] %vm430, %v707
        %735 = vst.msk [vmem:[%s722 + $0x60] sm:$0xff] %vm430, %v708
        %736 = vst.msk [vmem:[%s722 + $0x68] sm:$0xff] %vm430, %v709
        %737 = vst.msk [vmem:[%s722 + $0x70] sm:$0xff] %vm430, %v710
        %738 = vst.msk [vmem:[%s722 + $0x78] sm:$0xff] %vm430, %v711
        %739 = vst.msk [vmem:[%s722 + $0x80] sm:$0xff] %vm430, %v712
        %740 = vst.msk [vmem:[%s722 + $0x88] sm:$0xff] %vm430, %v713
        %741 = vst.msk [vmem:[%s722 + $0x90] sm:$0xff] %vm430, %v714
        %742 = vst.msk [vmem:[%s722 + $0x98] sm:$0xff] %vm430, %v715
        %743 = vst.msk [vmem:[%s722 + $0xa0] sm:$0xff] %vm430, %v716
        %744 = vst.msk [vmem:[%s722 + $0xa8] sm:$0xff] %vm430, %v717
        %745 = vst.msk [vmem:[%s722 + $0xb0] sm:$0xff] %vm430, %v718
        %746 = vst.msk [vmem:[%s722 + $0xb8] sm:$0xff] %vm430, %v719
        %747 = vst.msk [vmem:[%s722 + $0xc0] sm:$0xff] %vm430, %v720
        %v748 = vld [vmem:[#allocation4] sm:$0x1]
        %v749 = vsel %vm430, %v696, 0.0
        %v750 = vsel %vm430, %v697, 0.0
        %v751 = vadd.f32 %v749, %v750
        %v752 = vsel %vm430, %v698, 0.0
        %v753 = vadd.f32 %v751, %v752
        %v754 = vsel %vm430, %v699, 0.0
        %v755 = vadd.f32 %v753, %v754
        %v756 = vsel %vm430, %v700, 0.0
        %v757 = vadd.f32 %v755, %v756
        %v758 = vsel %vm430, %v701, 0.0
        %v759 = vadd.f32 %v757, %v758
        %v760 = vsel %vm430, %v702, 0.0
        %v761 = vadd.f32 %v759, %v760
        %v762 = vsel %vm430, %v703, 0.0
        %v763 = vadd.f32 %v761, %v762
        %v764 = vsel %vm430, %v704, 0.0
        %v765 = vadd.f32 %v763, %v764
        %v766 = vsel %vm430, %v705, 0.0
        %v767 = vadd.f32 %v765, %v766
        %v768 = vsel %vm430, %v706, 0.0
        %v769 = vadd.f32 %v767, %v768
        %v770 = vsel %vm430, %v707, 0.0
        %v771 = vadd.f32 %v769, %v770
        %v772 = vsel %vm430, %v708, 0.0
        %v773 = vadd.f32 %v771, %v772
        %v774 = vsel %vm430, %v709, 0.0
        %v775 = vadd.f32 %v773, %v774
        %v776 = vsel %vm430, %v710, 0.0
        %v777 = vadd.f32 %v775, %v776
        %v778 = vsel %vm430, %v711, 0.0
        %v779 = vadd.f32 %v777, %v778
        %v780 = vsel %vm430, %v712, 0.0
        %v781 = vadd.f32 %v779, %v780
        %v782 = vsel %vm430, %v713, 0.0
        %v783 = vadd.f32 %v781, %v782
        %v784 = vsel %vm430, %v714, 0.0
        %v785 = vadd.f32 %v783, %v784
        %v786 = vsel %vm430, %v715, 0.0
        %v787 = vadd.f32 %v785, %v786
        %v788 = vsel %vm430, %v716, 0.0
        %v789 = vadd.f32 %v787, %v788
        %v790 = vsel %vm430, %v717, 0.0
        %v791 = vadd.f32 %v789, %v790
        %v792 = vsel %vm430, %v718, 0.0
        %v793 = vadd.f32 %v791, %v792
        %v794 = vsel %vm430, %v719, 0.0
        %v795 = vadd.f32 %v793, %v794
        %v796 = vsel %vm430, %v720, 0.0
        %v797 = vadd.f32 %v795, %v796
        %v798 = vrot.slane %v797, 4
        %v799 = vadd.f32 %v797, %v798
        %v800 = vrot.slane %v799, 2
        %v801 = vadd.f32 %v799, %v800
        %v802 = vrot.slane %v801, 1
        %v803 = vadd.f32 %v801, %v802
        %v804 = vadd.f32 %v748, %v803
        %vm805 = vcmask 188416
        %806 = vst.msk [vmem:[#allocation4] sm:$0x1] %vm805, %v804
        %v807 = vld [vmem:[#allocation5] sm:$0x1]
        %v808 = vmul.f32 %v696, %v696
        %v809 = vmul.f32 %v697, %v697
        %v810 = vmul.f32 %v698, %v698
        %v811 = vmul.f32 %v699, %v699
        %v812 = vmul.f32 %v700, %v700
        %v813 = vmul.f32 %v701, %v701
        %v814 = vmul.f32 %v702, %v702
        %v815 = vmul.f32 %v703, %v703
        %v816 = vmul.f32 %v704, %v704
        %v817 = vmul.f32 %v705, %v705
        %v818 = vmul.f32 %v706, %v706
        %v819 = vmul.f32 %v707, %v707
        %v820 = vmul.f32 %v708, %v708
        %v821 = vmul.f32 %v709, %v709
        %v822 = vmul.f32 %v710, %v710
        %v823 = vmul.f32 %v711, %v711
        %v824 = vmul.f32 %v712, %v712
        %v825 = vmul.f32 %v713, %v713
        %v826 = vmul.f32 %v714, %v714
        %v827 = vmul.f32 %v715, %v715
        %v828 = vmul.f32 %v716, %v716
        %v829 = vmul.f32 %v717, %v717
        %v830 = vmul.f32 %v718, %v718
        %v831 = vmul.f32 %v719, %v719
        %v832 = vmul.f32 %v720, %v720
        %v833 = vsel %vm430, %v808, 0.0
        %v834 = vsel %vm430, %v809, 0.0
        %v835 = vadd.f32 %v833, %v834
        %v836 = vsel %vm430, %v810, 0.0
        %v837 = vadd.f32 %v835, %v836
        %v838 = vsel %vm430, %v811, 0.0
        %v839 = vadd.f32 %v837, %v838
        %v840 = vsel %vm430, %v812, 0.0
        %v841 = vadd.f32 %v839, %v840
        %v842 = vsel %vm430, %v813, 0.0
        %v843 = vadd.f32 %v841, %v842
        %v844 = vsel %vm430, %v814, 0.0
        %v845 = vadd.f32 %v843, %v844
        %v846 = vsel %vm430, %v815, 0.0
        %v847 = vadd.f32 %v845, %v846
        %v848 = vsel %vm430, %v816, 0.0
        %v849 = vadd.f32 %v847, %v848
        %v850 = vsel %vm430, %v817, 0.0
        %v851 = vadd.f32 %v849, %v850
        %v852 = vsel %vm430, %v818, 0.0
        %v853 = vadd.f32 %v851, %v852
        %v854 = vsel %vm430, %v819, 0.0
        %v855 = vadd.f32 %v853, %v854
        %v856 = vsel %vm430, %v820, 0.0
        %v857 = vadd.f32 %v855, %v856
        %v858 = vsel %vm430, %v821, 0.0
        %v859 = vadd.f32 %v857, %v858
        %v860 = vsel %vm430, %v822, 0.0
        %v861 = vadd.f32 %v859, %v860
        %v862 = vsel %vm430, %v823, 0.0
        %v863 = vadd.f32 %v861, %v862
        %v864 = vsel %vm430, %v824, 0.0
        %v865 = vadd.f32 %v863, %v864
        %v866 = vsel %vm430, %v825, 0.0
        %v867 = vadd.f32 %v865, %v866
        %v868 = vsel %vm430, %v826, 0.0
        %v869 = vadd.f32 %v867, %v868
        %v870 = vsel %vm430, %v827, 0.0
        %v871 = vadd.f32 %v869, %v870
        %v872 = vsel %vm430, %v828, 0.0
        %v873 = vadd.f32 %v871, %v872
        %v874 = vsel %vm430, %v829, 0.0
        %v875 = vadd.f32 %v873, %v874
        %v876 = vsel %vm430, %v830, 0.0
        %v877 = vadd.f32 %v875, %v876
        %v878 = vsel %vm430, %v831, 0.0
        %v879 = vadd.f32 %v877, %v878
        %v880 = vsel %vm430, %v832, 0.0
        %v881 = vadd.f32 %v879, %v880
        %v882 = vrot.slane %v881, 4
        %v883 = vadd.f32 %v881, %v882
        %v884 = vrot.slane %v883, 2
        %v885 = vadd.f32 %v883, %v884
        %v886 = vrot.slane %v885, 1
        %v887 = vadd.f32 %v885, %v886
        %v888 = vadd.f32 %v807, %v887
        %889 = vst.msk [vmem:[#allocation5] sm:$0x1] %vm805, %v888
      $region48: #{tpu_custom_call.1} parent=39 // pred_fallthru
        _
      %p890 = scmp.eq.s32.totalorder %s20, 1
      %p891 = pnand %p890, %p260
      %p892 = pneg %p891
      // Predicated region
      $region49: #{tpu_custom_call.1} parent=39 // pred_check
        _
      $region50: #{tpu_custom_call.1} parent=39 // pred_check_branch
        %894 = sbr.rel (%p891) target = $region52
      $region51: #{tpu_custom_call.1} parent=39 // pred_region
        %v895 = vld [vmem:[#allocation4] sm:$0x1]
        %v896 = vrcp.pop 200.0
        %v897 = vmul.f32 %v895, %v896
        %v898 = vld [vmem:[#allocation5] sm:$0x1]
        %v899 = vmul.f32 %v898, %v896
        %v900 = vmul.f32 %v897, %v897
        %v901 = vsub.f32 %v899, %v900
        %v902 = vmax.f32 %v901, 0.0
        %v903 = vadd.f32 %v902, 1e-05
        %v904 = vrsqrt.pop %v903
        %v905 = vld [vmem:[%s3] sm:$0x1]
        %v906 = vmul.f32 %v905, %v904
        %vm907 = vcmask 188416
        %908 = vst.msk [vmem:[#allocation6] sm:$0x1] %vm907, %v906
        %v909 = vld [vmem:[%s4] sm:$0x1]
        %v910 = vmul.f32 %v897, %v906
        %v911 = vsub.f32 %v909, %v910
        %912 = vst.msk [vmem:[#allocation7] sm:$0x1] %vm907, %v911
      $region52: #{tpu_custom_call.1} parent=39 // pred_fallthru
        _
      // Predicated region
      $region53: #{tpu_custom_call.1} parent=39 // pred_check
        %p913 = pneg %p890
      $region54: #{tpu_custom_call.1} parent=39 // pred_check_branch
        %915 = sbr.rel (%p913) target = $region56
      $region55: #{tpu_custom_call.1} parent=39 // pred_region
        %s916 = smul.u32 %s21, 200
        %s917 = scalar_lea.vmem [#allocation3], %s916
        %v918 = vld [vmem:[%s917] sm:$0xff]
        %v919 = vld [vmem:[%s917 + $0x8] sm:$0xff]
        %v920 = vld [vmem:[%s917 + $0x10] sm:$0xff]
        %v921 = vld [vmem:[%s917 + $0x18] sm:$0xff]
        %v922 = vld [vmem:[%s917 + $0x20] sm:$0xff]
        %v923 = vld [vmem:[%s917 + $0x28] sm:$0xff]
        %v924 = vld [vmem:[%s917 + $0x30] sm:$0xff]
        %v925 = vld [vmem:[%s917 + $0x38] sm:$0xff]
        %v926 = vld [vmem:[%s917 + $0x40] sm:$0xff]
        %v927 = vld [vmem:[%s917 + $0x48] sm:$0xff]
        %v928 = vld [vmem:[%s917 + $0x50] sm:$0xff]
        %v929 = vld [vmem:[%s917 + $0x58] sm:$0xff]
        %v930 = vld [vmem:[%s917 + $0x60] sm:$0xff]
        %v931 = vld [vmem:[%s917 + $0x68] sm:$0xff]
        %v932 = vld [vmem:[%s917 + $0x70] sm:$0xff]
        %v933 = vld [vmem:[%s917 + $0x78] sm:$0xff]
        %v934 = vld [vmem:[%s917 + $0x80] sm:$0xff]
        %v935 = vld [vmem:[%s917 + $0x88] sm:$0xff]
        %v936 = vld [vmem:[%s917 + $0x90] sm:$0xff]
        %v937 = vld [vmem:[%s917 + $0x98] sm:$0xff]
        %v938 = vld [vmem:[%s917 + $0xa0] sm:$0xff]
        %v939 = vld [vmem:[%s917 + $0xa8] sm:$0xff]
        %v940 = vld [vmem:[%s917 + $0xb0] sm:$0xff]
        %v941 = vld [vmem:[%s917 + $0xb8] sm:$0xff]
        %v942 = vld [vmem:[%s917 + $0xc0] sm:$0xff]
        %v943 = vld [vmem:[#allocation6] sm:$0x1]
        %v945 = vlaneseq
        %v946 = vshrl.u32 %v945, 7
        %v947 = vsub.s32 0, %v946
        %v948 = vrot.slane %v943, %v947
        %v950 = vmul.f32 %v918, %v948
        %v951 = vmul.f32 %v919, %v948
        %v952 = vmul.f32 %v920, %v948
        %v953 = vmul.f32 %v921, %v948
        %v954 = vmul.f32 %v922, %v948
        %v955 = vmul.f32 %v923, %v948
        %v956 = vmul.f32 %v924, %v948
        %v957 = vmul.f32 %v925, %v948
        %v958 = vmul.f32 %v926, %v948
        %v959 = vmul.f32 %v927, %v948
        %v960 = vmul.f32 %v928, %v948
        %v961 = vmul.f32 %v929, %v948
        %v962 = vmul.f32 %v930, %v948
        %v963 = vmul.f32 %v931, %v948
        %v964 = vmul.f32 %v932, %v948
        %v965 = vmul.f32 %v933, %v948
        %v966 = vmul.f32 %v934, %v948
        %v967 = vmul.f32 %v935, %v948
        %v968 = vmul.f32 %v936, %v948
        %v969 = vmul.f32 %v937, %v948
        %v970 = vmul.f32 %v938, %v948
        %v971 = vmul.f32 %v939, %v948
        %v972 = vmul.f32 %v940, %v948
        %v973 = vmul.f32 %v941, %v948
        %v974 = vmul.f32 %v942, %v948
        %v975 = vld [vmem:[#allocation7] sm:$0x1]
        %v977 = vlaneseq
        %v978 = vshrl.u32 %v977, 7
        %v979 = vsub.s32 0, %v978
        %v980 = vrot.slane %v975, %v979
        %v982 = vadd.f32 %v950, %v980
        %v983 = vadd.f32 %v951, %v980
        %v984 = vadd.f32 %v952, %v980
        %v985 = vadd.f32 %v953, %v980
        %v986 = vadd.f32 %v954, %v980
        %v987 = vadd.f32 %v955, %v980
        %v988 = vadd.f32 %v956, %v980
        %v989 = vadd.f32 %v957, %v980
        %v990 = vadd.f32 %v958, %v980
        %v991 = vadd.f32 %v959, %v980
        %v992 = vadd.f32 %v960, %v980
        %v993 = vadd.f32 %v961, %v980
        %v994 = vadd.f32 %v962, %v980
        %v995 = vadd.f32 %v963, %v980
        %v996 = vadd.f32 %v964, %v980
        %v997 = vadd.f32 %v965, %v980
        %v998 = vadd.f32 %v966, %v980
        %v999 = vadd.f32 %v967, %v980
        %v1000 = vadd.f32 %v968, %v980
        %v1001 = vadd.f32 %v969, %v980
        %v1002 = vadd.f32 %v970, %v980
        %v1003 = vadd.f32 %v971, %v980
        %v1004 = vadd.f32 %v972, %v980
        %v1005 = vadd.f32 %v973, %v980
        %v1006 = vadd.f32 %v974, %v980
        %vm1007 = vcmask 195584
        %1008 = vst.msk [vmem:[%s256] sm:$0xff] %vm1007, %v982
        %1009 = vst.msk [vmem:[%s256 + $0x8] sm:$0xff] %vm1007, %v983
        %1010 = vst.msk [vmem:[%s256 + $0x10] sm:$0xff] %vm1007, %v984
        %1011 = vst.msk [vmem:[%s256 + $0x18] sm:$0xff] %vm1007, %v985
        %1012 = vst.msk [vmem:[%s256 + $0x20] sm:$0xff] %vm1007, %v986
        %1013 = vst.msk [vmem:[%s256 + $0x28] sm:$0xff] %vm1007, %v987
        %1014 = vst.msk [vmem:[%s256 + $0x30] sm:$0xff] %vm1007, %v988
        %1015 = vst.msk [vmem:[%s256 + $0x38] sm:$0xff] %vm1007, %v989
        %1016 = vst.msk [vmem:[%s256 + $0x40] sm:$0xff] %vm1007, %v990
        %1017 = vst.msk [vmem:[%s256 + $0x48] sm:$0xff] %vm1007, %v991
        %1018 = vst.msk [vmem:[%s256 + $0x50] sm:$0xff] %vm1007, %v992
        %1019 = vst.msk [vmem:[%s256 + $0x58] sm:$0xff] %vm1007, %v993
        %1020 = vst.msk [vmem:[%s256 + $0x60] sm:$0xff] %vm1007, %v994
        %1021 = vst.msk [vmem:[%s256 + $0x68] sm:$0xff] %vm1007, %v995
        %1022 = vst.msk [vmem:[%s256 + $0x70] sm:$0xff] %vm1007, %v996
        %1023 = vst.msk [vmem:[%s256 + $0x78] sm:$0xff] %vm1007, %v997
        %1024 = vst.msk [vmem:[%s256 + $0x80] sm:$0xff] %vm1007, %v998
        %1025 = vst.msk [vmem:[%s256 + $0x88] sm:$0xff] %vm1007, %v999
        %1026 = vst.msk [vmem:[%s256 + $0x90] sm:$0xff] %vm1007, %v1000
        %1027 = vst.msk [vmem:[%s256 + $0x98] sm:$0xff] %vm1007, %v1001
        %1028 = vst.msk [vmem:[%s256 + $0xa0] sm:$0xff] %vm1007, %v1002
        %1029 = vst.msk [vmem:[%s256 + $0xa8] sm:$0xff] %vm1007, %v1003
        %1030 = vst.msk [vmem:[%s256 + $0xb0] sm:$0xff] %vm1007, %v1004
        %1031 = vst.msk [vmem:[%s256 + $0xb8] sm:$0xff] %vm1007, %v1005
        %1032 = vst.msk [vmem:[%s256 + $0xc0] sm:$0xff] %vm1007, %v1006
      $region56: #{tpu_custom_call.1} parent=39 // pred_fallthru
        _
      %s1033 = smul.u32 %s21, %s20
      %s1034 = smul.u32 25, %s1033
      %p1035 = scmp.lt.s32.totalorder %s1034, 24
      %s1036 = scalar_select %p1035, %s1034, 24
      %s1037 = smul.addr %s1036, 8
      %s1038 = scalar_lea.vmem %s5, %s1037
      // Predicated region
      $region57: #{tpu_custom_call.1} parent=39 // pred_check
        %p1039 = pneg %p162
      $region58: #{tpu_custom_call.1} parent=39 // pred_check_branch
        %1041 = sbr.rel (%p1039) target = $region60
      $region59: #{tpu_custom_call.1} parent=39 // pred_region
        %s1042 = smul.u32 %s21, %s20
        %s1043 = smul.u32 25, %s1042
      $region60: #{tpu_custom_call.1} parent=39 // pred_fallthru
        _
    $region40: #{tpu_custom_call.1} parent=5 // pred_fallthru
      _
    %p1044 = scmp.le.s32.totalorder 2, %s11
    // Predicated region
    $region61: #{tpu_custom_call.1} parent=5 // pred_check
      %p1045 = pneg %p1044
    $region62: #{tpu_custom_call.1} parent=5 // pred_check_branch
      %1047 = sbr.rel (%p1045) target = $region64
    $region63: #{tpu_custom_call.1} parent=5 // pred_region
      %s1048 = ssub.s32 %s11, 2
      // Predicated region
      $region65: #{tpu_custom_call.1} parent=63 // pred_check
        %p1049 = pneg %p168
      $region66: #{tpu_custom_call.1} parent=63 // pred_check_branch
        %1051 = sbr.rel (%p1049) target = $region68
      $region67: #{tpu_custom_call.1} parent=63 // pred_region
        %s1052 = smul.u32 %s23, %s22
        %s1053 = smul.u32 25, %s1052
        %p1054 = scmp.lt.s32.totalorder %s1053, 24
        %s1055 = scalar_select %p1054, %s1053, 24
        %s1056 = smul.addr %s1055, 8
        %s1057 = scalar_lea.vmem %s5, %s1056
      $region68: #{tpu_custom_call.1} parent=63 // pred_fallthru
        _
    $region64: #{tpu_custom_call.1} parent=5 // pred_fallthru
      _
  $region6: #{tpu_custom_call.1} parent=0 // loop_footer
    %s15 = sadd.s32 1, %s11
  $region7: #{tpu_custom_call.1} parent=0 // loop_footer_branch
    %10 = sbr.rel target = $region3
  $region8: #{tpu_custom_call.1} parent=0 // loop_exit
    _

</llo_original>
